<compile_context>
chip_gen: v6e
topology: v6e:2x2x1
jax: 0.10.0
libtpu: 0.0.40
codegen_flags: <defaults>
</compile_context>

<pallas_src>
import numpy as np
import jax
import jax.numpy as jnp
from jax.experimental import pallas as pl
from jax.experimental.pallas import tpu as pltpu


# ----------------------------------------------------------------------------
# Dense reference parameters (mirrors the PyTorch init exactly).  Used for the
# correctness check and for the non-canonical fallback path.
# ----------------------------------------------------------------------------
def init_weights_bias(size_in, size_out, image_shape):
    weights = np.zeros((size_out, size_in), dtype=np.float32)
    bias = np.zeros((size_out,), dtype=np.float32)
    image_channel, image_height, image_width = image_shape
    input_block_size = (size_in - image_channel) // 2
    block_size = size_out // (1 + image_channel)
    for i in range(1 + image_channel):
        for j in range(block_size):
            r, c = (j // image_width, j % image_width)
            weights[i * block_size + j, r] = 1.0
            weights[i * block_size + j, input_block_size + c] = 1.0
            if i >= 1:
                weights[i * block_size + j, -i] = 1.0
    bias[0:block_size] = -1.0
    bias[block_size:] = -2.0
    return weights, bias


# ----------------------------------------------------------------------------
# Kernels
# ----------------------------------------------------------------------------
def occlusion_plane_kernel(plane_ref, chb_ref, o_ref):
    # plane_ref: (1, TILE_L)      plane[h*W + w] = x[h] + x[ibs + w]
    # chb_ref  : (TILE_C, 1)      per-channel (x[size_in - i] term + bias)
    # o_ref    : (TILE_C, TILE_L) lane-dense output tile
    o_ref[...] = plane_ref[...] + chb_ref[...]


def dense_matvec_kernel(x_ref, wT_ref, b_ref, o_ref):
    # Exact-parameter fallback for non-canonical layouts: out = W @ x + b.
    # x_ref: (K, 1); wT_ref: (K, TILE_M); b_ref / o_ref: (1, TILE_M)
    prod = x_ref[...] * wT_ref[...]                       # (K, TILE_M)
    o_ref[...] = jnp.sum(prod, axis=0, keepdims=True) + b_ref[...]


# ----------------------------------------------------------------------------
# Helpers
# ----------------------------------------------------------------------------
def _tpu_kind():
    try:
        d = jax.devices()[0]
        return d.device_kind.lower() if d.platform == "tpu" else ""
    except Exception:
        return ""


def _largest_aligned_divisor(total, align, limit):
    """Largest multiple of `align` that divides `total` and is <= limit (or None)."""
    best, d = None, align
    lim = min(total, limit)
    while d <= lim:
        if total % d == 0:
            best = d
        d += align
    return best


# ----------------------------------------------------------------------------
# Factory: resolves all structural constants once (analogue of __init__) and
# returns a jitted forward(x) -> (size_out,) matching weights @ x + bias.
# ----------------------------------------------------------------------------
def make_occlusion_third_layer(size_in, size_out, image_shape, tile_cap_bytes=None):
    C, H, W = image_shape
    input_block_size = (size_in - C) // 2
    n_blocks = 1 + C
    block_size = size_out // n_blocks
    L = H * W

    kind = _tpu_kind()
    is_v7x = ("v7" in kind) or ("7x" in kind)
    if tile_cap_bytes is None:
        if ("v5e" in kind) or ("v5 lite" in kind) or ("v5lite" in kind):
            tile_cap_bytes = 6 << 20        # v5e: 16 MiB default scoped VMEM
        elif is_v7x:
            tile_cap_bytes = 10 << 20       # v7x: only 64 MiB physical VMEM
        elif "v6" in kind:
            tile_cap_bytes = 12 << 20
        else:
            tile_cap_bytes = 8 << 20

    # Structured additive decomposition is valid only for the canonical layout
    # (full image blocks, non-overlapping row/column/channel index ranges).
    canonical = (
        size_out == n_blocks * L
        and block_size == L
        and 1 <= H <= input_block_size
        and input_block_size + W <= size_in - C
        and W >= 1
    )

    if not canonical:
        # ---------- dense fallback (exact PyTorch semantics, any layout) -----
        w_np, b_np = init_weights_bias(size_in, size_out, image_shape)
        wT = jnp.asarray(w_np.T)                          # (K, M)
        b2 = jnp.asarray(b_np).reshape(1, size_out)

        tile_m = size_out
        if size_in * size_out * 4 > tile_cap_bytes:
            cand = _largest_aligned_divisor(
                size_out, 128, max(128, tile_cap_bytes // (4 * size_in)))
            if cand is not None:
                tile_m = cand
        grid = (size_out // tile_m,)
        vmem_limit = int(min(48 << 20,
                             max(32 << 20, 3 * size_in * tile_m * 4 + (4 << 20))))

        call = pl.pallas_call(
            dense_matvec_kernel,
            out_shape=jax.ShapeDtypeStruct((1, size_out), jnp.float32),
            grid_spec=pltpu.PrefetchScalarGridSpec(
                num_scalar_prefetch=0,
                grid=grid,
                in_specs=[
                    pl.BlockSpec((size_in, 1), lambda m: (0, 0)),
                    pl.BlockSpec((size_in, tile_m), lambda m: (0, m)),
                    pl.BlockSpec((1, tile_m), lambda m: (0, m)),
                ],
                out_specs=pl.BlockSpec((1, tile_m), lambda m: (0, m)),
            ),
            compiler_params=pltpu.CompilerParams(
                dimension_semantics=("parallel",),
                vmem_limit_bytes=vmem_limit),
            cost_estimate=pl.CostEstimate(
                flops=2 * size_out * size_in,
                transcendentals=0,
                bytes_accessed=4 * (size_out * size_in + size_in + 2 * size_out)),
        )

        @jax.jit
        def forward(x):
            xc = x.reshape(size_in, 1).astype(jnp.float32)
            return call(xc, wT, b2).reshape(size_out)

        return forward

    # ---------------- structured fast path (pure VPU broadcast-add) ----------
    # Tile selection: shrink the channel axis first (keep lanes full), then the
    # lane axis in multiples of 128.  All tile sizes divide the array dims.
    tile_c = n_blocks
    if n_blocks * L * 4 > tile_cap_bytes and n_blocks >= 8:
        cand = _largest_aligned_divisor(
            n_blocks, 8, max(8, tile_cap_bytes // (4 * L)))
        if cand is not None:
            tile_c = cand
    tile_l = L
    if tile_c * L * 4 > tile_cap_bytes:
        cand = _largest_aligned_divisor(
            L, 128, max(128, tile_cap_bytes // (4 * tile_c)))
        if cand is not None:
            tile_l = cand

    # v7x has 2 TensorCores: make sure there are >= 2 parallel blocks if the
    # shape allows it (gated on device so v5e/v6e get no extra grid steps).
    if is_v7x and (n_blocks // tile_c) * (L // tile_l) < 2:
        if tile_l % 256 == 0:
            tile_l //= 2
        elif tile_c % 16 == 0:
            tile_c //= 2

    num_l, num_c = L // tile_l, n_blocks // tile_c
    vmem_limit = int(min(48 << 20,
                         max(32 << 20, 3 * tile_c * tile_l * 4 + (4 << 20))))

    call = pl.pallas_call(
        occlusion_plane_kernel,
        out_shape=jax.ShapeDtypeStruct((n_blocks, L), jnp.float32),
        grid_spec=pltpu.PrefetchScalarGridSpec(
            num_scalar_prefetch=0,
            # Lane-blocks outer, channel-blocks inner: the plane block's index
            # does not change along the inner axis -> DMA'd once per lane block.
            grid=(num_l, num_c),
            in_specs=[
                pl.BlockSpec((1, tile_l), lambda j, i: (0, j)),      # plane
                pl.BlockSpec((tile_c, 1), lambda j, i: (i, 0)),      # chan + bias
            ],
            out_specs=pl.BlockSpec((tile_c, tile_l), lambda j, i: (i, j)),
        ),
        compiler_params=pltpu.CompilerParams(
            # Every tile is an independent output block -> both axes parallel.
            dimension_semantics=("parallel", "parallel"),
            vmem_limit_bytes=vmem_limit),
        cost_estimate=pl.CostEstimate(
            flops=2 * size_out,
            transcendentals=0,
            bytes_accessed=4 * (size_out + L + n_blocks)),
    )

    @jax.jit
    def forward(x):
        x = x.reshape(size_in).astype(jnp.float32)
        # plane[h*W + w] = x[h] + x[ibs + w]   (O(H*W) work, tiny vs. output)
        plane = (x[:H][:, None]
                 + x[input_block_size:input_block_size + W][None, :]).reshape(1, L)
        if C > 0:
            ch = x[size_in - C:][::-1]          # ch[i-1] = x[size_in - i], i = 1..C
            chb = jnp.concatenate(
                [jnp.full((1,), -1.0, dtype=jnp.float32), ch - 2.0])
        else:
            chb = jnp.full((1,), -1.0, dtype=jnp.float32)
        out2 = call(plane, chb.reshape(n_blocks, 1))
        return out2.reshape(size_out)           # row-major (i, h, w) == PyTorch order

    return forward


if __name__ == "__main__":
    key = jax.random.PRNGKey(0)

    # 1) Canonical small shape (single tile):        C=4, H=W=8  -> out 320
    # 2) Canonical, tile cap forced tiny to exercise the lane-tiled grid path
    # 3) Overlapping index blocks (H > input_block_size) -> dense fallback path
    configs = (
        ((4, 8, 8),   20,   320, None),
        ((3, 16, 16), 35,  1024, 2048),
        ((4, 4, 4),   10,    80, None),
    )

    for image_shape, size_in, size_out, cap in configs:
        fwd = make_occlusion_third_layer(size_in, size_out, image_shape,
                                         tile_cap_bytes=cap)
        key, sub = jax.random.split(key)
        x = jax.random.normal(sub, (size_in,), dtype=jnp.float32)
        out = jax.block_until_ready(fwd(x))

        # Reference: dense weights @ x + bias (exact PyTorch semantics).
        w_np, b_np = init_weights_bias(size_in, size_out, image_shape)
        ref = w_np @ np.asarray(x) + b_np
        np.testing.assert_allclose(np.asarray(out), ref, rtol=1e-5, atol=1e-5)

    print("KERNEL_OK")
</pallas_src>

<mosaic_0001>
module attributes {stable_mosaic.version = 11 : i64} {
  func.func @occlusion_plane_kernel(%arg0: i32, %arg1: i32, %arg2: memref<1x64xf32, #tpu.memory_space<vmem>>, %arg3: memref<5x1xf32, #tpu.memory_space<vmem>>, %arg4: memref<5x64xf32, #tpu.memory_space<vmem>>) attributes {dimension_semantics = [#tpu.dimension_semantics<parallel>, #tpu.dimension_semantics<parallel>], iteration_bounds = array<i64: 1, 1>, scalar_prefetch = 0 : i64, scratch_operands = 0 : i64, tpu.core_type = #tpu.core_type<tc>, window_params = [{transform_indices = @transform_0, window_bounds = array<i64: 1, 64>}, {transform_indices = @transform_1, window_bounds = array<i64: 5, 1>}, {transform_indices = @transform_2, window_bounds = array<i64: 5, 64>}]} {
    %c0 = arith.constant 0 : index
    %c0_0 = arith.constant 0 : index
    %0 = vector.load %arg2[%c0, %c0_0] : memref<1x64xf32, #tpu.memory_space<vmem>>, vector<1x64xf32>
    %c0_1 = arith.constant 0 : index
    %c0_2 = arith.constant 0 : index
    %1 = vector.load %arg3[%c0_1, %c0_2] : memref<5x1xf32, #tpu.memory_space<vmem>>, vector<5x1xf32>
    %2 = vector.broadcast %0 : vector<1x64xf32> to vector<5x64xf32>
    %3 = vector.broadcast %1 : vector<5x1xf32> to vector<5x64xf32>
    %4 = arith.addf %2, %3 : vector<5x64xf32>
    %c0_3 = arith.constant 0 : index
    %c0_4 = arith.constant 0 : index
    %5 = vector.load %arg4[%c0_3, %c0_4] : memref<5x64xf32, #tpu.memory_space<vmem>>, vector<5x64xf32>
    tpu.vector_store %arg4[%c0_3, %c0_4], %4 {strides = array<i32>} : memref<5x64xf32, #tpu.memory_space<vmem>>, vector<5x64xf32>,
    return
  }
  func.func @transform_0(%arg0: i32, %arg1: i32) -> (i32, i32) {
    %c0_i32 = arith.constant 0 : i32
    %c0_i32_0 = arith.constant 0 : i32
    return %c0_i32, %arg0 : i32, i32
  }
  func.func @transform_1(%arg0: i32, %arg1: i32) -> (i32, i32) {
    %c0_i32 = arith.constant 0 : i32
    %c0_i32_0 = arith.constant 0 : i32
    return %arg1, %c0_i32 : i32, i32
  }
  func.func @transform_2(%arg0: i32, %arg1: i32) -> (i32, i32) {
    %c0_i32 = arith.constant 0 : i32
    return %arg1, %arg0 : i32, i32
  }
}

</mosaic_0001>

<llo_original>
// kernel: forward.1
$region0: #{forward.1}
  #allocation0 [shape = 'u32[]', space=smem, size = 0x4, offset = 0x4, fixed_abs, tag = 'smem constant byte address 0x4 - core index']
  #allocation1 [shape = 'u32[144,128]{1,0:T(1,128)}', space=vmem, size = 0x12000, scoped, tag = 'internal scratch']
  %s0 = inlined_call_operand.vmem [shape: f32[1,64], index: 0, kind: input, shape index: {}]
  %s1 = inlined_call_operand.vmem [shape: f32[5,1], index: 1, kind: input, shape index: {}]
  %s2 = inlined_call_operand.vmem [shape: f32[5,64], index: 2, kind: output, shape index: {}]
  %s3 = sld [smem:[#allocation0]]
  $region18: #{forward.1} parent=0
    _
  %s5 = ssub.s32 1, %s3
  %s6 = scalar_select 0, %s5, %s3
  // Predicated region
  $region2: #{forward.1} parent=0 // pred_check
    _
  $region3: #{forward.1} parent=0 // pred_check_branch
    %8 = sbr.rel (0) target = $region5
  $region4: #{forward.1} parent=0 // pred_region
    _
  $region5: #{forward.1} parent=0 // pred_fallthru
    _
  // Predicated region
  $region6: #{forward.1} parent=0 // pred_check
    _
  $region7: #{forward.1} parent=0 // pred_check_branch
    %10 = sbr.rel (0) target = $region9
  $region8: #{forward.1} parent=0 // pred_region
    _
  $region9: #{forward.1} parent=0 // pred_fallthru
    _
  %v11 = vld [vmem:[%s0] sm:$0x1]
  %v12 = vld [vmem:[%s1] sm:$0x1f]
  %v14 = vlaneseq
  %v15 = vshrl.u32 %v14, 7
  %v16 = vsub.s32 0, %v15
  %v17 = vrot.slane %v11, %v16
  %20 = vset.pattern.permute.xlu0 0
  %21 = vperm.xlu0 %20, %v12
  %v22 = vpop.permute.xlu0 %21
  %v24 = vadd.f32 %v17, %v22
  %vm25 = vcmask 520192
  %26 = vst.msk [vmem:[%s2] sm:$0x1f] %vm25, %v24
  // Predicated region
  $region10: #{forward.1} parent=0 // pred_check
    _
  $region11: #{forward.1} parent=0 // pred_check_branch
    %28 = sbr.rel (0) target = $region13
  $region12: #{forward.1} parent=0 // pred_region
    _
  $region13: #{forward.1} parent=0 // pred_fallthru
    _
  // Predicated region
  $region14: #{forward.1} parent=0 // pred_check
    _
  $region15: #{forward.1} parent=0 // pred_check_branch
    %30 = sbr.rel (0) target = $region17
  $region16: #{forward.1} parent=0 // pred_region
    _
  $region17: #{forward.1} parent=0 // pred_fallthru
    _

</llo_original>
